<compile_context>
chip_gen: v7x
topology: tpu7x:2x2x1
jax: 0.10.0
libtpu: 0.0.40
codegen_flags: <defaults>
</compile_context>

<pallas_src>
import functools

import jax
import jax.numpy as jnp
from jax.experimental import pallas as pl
from jax.experimental.pallas import tpu as pltpu


def _round_up(x, m):
    return ((x + m - 1) // m) * m


def _vmem_budget_bytes():
    """Per-core VMEM budget with compiler headroom (generation-aware)."""
    cap = 64 << 20  # conservative fallback (v7x per-core physical VMEM)
    try:
        cap = int(pltpu.get_tpu_info().vmem_capacity_bytes)
    except Exception:
        pass
    return max(32 << 20, (cap * 3) // 4)


def _proto_decoder_kernel(emb_ref, w_ref, b_ref, prot2T_ref, p2n_ref, out_ref,
                          *, matmul_dtype):
    # Hot path #1: projection to metric space (MXU, f32 accumulation).
    a = emb_ref[...]
    if a.dtype != matmul_dtype:
        a = a.astype(matmul_dtype)
    enc = jnp.dot(a, w_ref[...], preferred_element_type=jnp.float32) + b_ref[...]  # [tn, Dp] f32

    # Hot path #2: x . (2 p)^T (MXU). Prototypes arrive pre-transposed and pre-scaled by 2.
    e = enc if matmul_dtype == jnp.float32 else enc.astype(matmul_dtype)
    xp2 = jnp.dot(e, prot2T_ref[...], preferred_element_type=jnp.float32)           # [tn, kn] f32

    # ||x||^2 per row (VPU mul + XLU lane reduce).
    x2 = jnp.sum(enc * enc, axis=-1, keepdims=True)                                 # [tn, 1]

    # scores = -dist = 2 x.p - ||x||^2 - ||p||^2   (p2n = -||p||^2 precomputed).
    # Clamp at 0: the reference squared distance is >= 0, so scores must be <= 0.
    out_ref[...] = jnp.minimum(xp2 + p2n_ref[...] - x2, 0.0)


def prototypical_decoder(embedded, weight, bias, prototypes, *,
                         tile_n=None, tile_k=None, use_bf16_matmul=False):
    """embedded: [N, E] (streamed as-is, any float dtype), weight: [E, D]
    (pre-transposed for x @ W), bias: [1, D], prototypes: [K, D] -> scores [N, K] f32."""
    N, E = embedded.shape
    E2, D = weight.shape
    K, D2 = prototypes.shape
    assert E == E2 and D == D2

    f32 = jnp.float32
    matmul_dtype = jnp.bfloat16 if use_bf16_matmul else f32
    mm_bytes = 2 if use_bf16_matmul else 4
    emb_bytes = jnp.dtype(embedded.dtype).itemsize

    # Pad ONLY the small grid-invariant operands. Zero padding is exact here:
    # pad D columns of enc are exactly 0 (w pad cols = 0, bias pad = 0), pad K columns
    # are sliced off below. The big embedded stream is not padded/copied.
    Dp = _round_up(D, 128)
    Kp = _round_up(K, 128)                                    # lane-dense output stores

    w_p = jnp.pad(weight.astype(matmul_dtype), ((0, 0), (0, Dp - D)))            # [E, Dp]
    b_p = jnp.pad(bias.astype(f32), ((0, 0), (0, Dp - D)))                        # [1, Dp]
    prot_f32 = prototypes.astype(f32)
    # 2x folded into the pre-transposed prototypes; ||p||^2 pre-negated (grid-invariant work).
    prot2T_p = jnp.pad((2.0 * prot_f32).T,
                       ((0, Dp - D), (0, Kp - K))).astype(matmul_dtype)            # [Dp, Kp]
    p2n_p = jnp.pad(-jnp.sum(prot_f32 * prot_f32, axis=-1),
                    (0, Kp - K)).reshape(1, Kp)                                    # [1, Kp] f32

    # ---- tile selection -----------------------------------------------------
    if tile_k is None:
        kn = min(Kp, 1024)                                    # multiple of 128 (Kp is)
    else:
        kn = min(Kp, _round_up(max(tile_k, 1), 128))
    grid_k = pl.cdiv(Kp, kn)
    # Prototypes are truly grid-invariant only when they fit a single K tile.
    prot_bufs = 1 if grid_k == 1 else None

    budget = _vmem_budget_bytes()

    def vmem_needed(tn_):
        inv = mm_bytes * E * Dp + 4 * Dp                                        # w + bias (1 buffer)
        inv += (mm_bytes * Dp * kn + 4 * kn) * (1 if grid_k == 1 else 2)        # protT + p2n
        stream = 2 * tn_ * E * emb_bytes + 2 * tn_ * kn * 4                     # emb in + out (double-buffered)
        interm = tn_ * Dp * 4 + tn_ * Dp * mm_bytes + tn_ * kn * 4 + tn_ * 8    # enc, cast, xp, x2
        return inv + stream + interm

    if tile_n is None:
        tn = min(1024, _round_up(N, 8))
        # v7x has 2 TensorCores: make sure the parallel row axis has >= 2 steps
        # whenever there is more than one tile's worth of rows.
        if N > 8 and pl.cdiv(N, tn) < 2:
            tn = max(8, _round_up(pl.cdiv(N, 2), 8))
    else:
        tn = max(8, _round_up(min(tile_n, _round_up(N, 8)), 8))
    while tn > 8 and vmem_needed(tn) > budget:
        tn = max(8, _round_up(tn // 2, 8))
    grid_n = pl.cdiv(N, tn)

    vmem_limit = int(min(max(vmem_needed(tn) + (4 << 20), 32 << 20), budget))

    # ---- pallas call --------------------------------------------------------
    def _spec(shape, index_map, buffers=None):
        if buffers is None:
            return pl.BlockSpec(shape, index_map)
        return pl.BlockSpec(shape, index_map, pipeline_mode=pl.Buffered(buffers))

    kernel = functools.partial(_proto_decoder_kernel, matmul_dtype=matmul_dtype)

    flops = 2 * N * E * Dp * grid_k + 2 * N * Dp * Kp + 3 * N * Kp
    bytes_accessed = (N * E * emb_bytes + N * Kp * 4
                      + mm_bytes * (E * Dp + Dp * Kp) + 4 * (Dp + Kp))

    out = pl.pallas_call(
        kernel,
        out_shape=jax.ShapeDtypeStruct((N, Kp), jnp.float32),
        grid_spec=pltpu.PrefetchScalarGridSpec(
            num_scalar_prefetch=0,
            grid=(grid_n, grid_k),                                     # K innermost: emb tile reused
            in_specs=[
                _spec((tn, E), lambda i, j: (i, 0)),                   # embedded rows (streamed)
                _spec((E, Dp), lambda i, j: (0, 0), buffers=1),        # linear weight (invariant)
                _spec((1, Dp), lambda i, j: (0, 0), buffers=1),        # linear bias (invariant)
                _spec((Dp, kn), lambda i, j: (0, j), buffers=prot_bufs),  # 2*prototypes^T
                _spec((1, kn), lambda i, j: (0, j), buffers=prot_bufs),   # -||p||^2
            ],
            out_specs=_spec((tn, kn), lambda i, j: (i, j)),
        ),
        compiler_params=pltpu.CompilerParams(
            dimension_semantics=("parallel", "parallel"),              # megacore-shardable on v7x
            vmem_limit_bytes=vmem_limit),
        cost_estimate=pl.CostEstimate(flops=flops, transcendentals=0,
                                      bytes_accessed=bytes_accessed),
    )(embedded, w_p, b_p, prot2T_p, p2n_p)

    return out[:, :K]


def _reference(embedded, weight, bias, prototypes):
    enc = embedded @ weight + bias                       # [N, D]
    diff = enc[:, None, :] - prototypes[None, :, :]      # [N, K, D]
    dist = jnp.sum(diff * diff, axis=-1)                 # squared Euclidean (flair)
    return -dist


if __name__ == "__main__":
    # Module config (small, consistent with the forward):
    #   embeddings_size=32, prototype_size=16 (-> Linear 32->16), num_prototypes=8
    # Input: batch=2, seq=8 flattened to N=16 embedded tokens.
    num_prototypes, embeddings_size, prototype_size = 8, 32, 16
    batch, seq = 2, 8
    N = batch * seq

    key = jax.random.PRNGKey(0)
    k_emb, k_w, k_b = jax.random.split(key, 3)

    embedded = jax.random.normal(k_emb, (N, embeddings_size), dtype=jnp.float32)

    # metric_space_decoder: Linear(embeddings_size, prototype_size), xavier_uniform_ weight.
    limit = (6.0 / (embeddings_size + prototype_size)) ** 0.5
    weight = jax.random.uniform(k_w, (embeddings_size, prototype_size),
                                dtype=jnp.float32, minval=-limit, maxval=limit)
    bbound = 1.0 / (embeddings_size ** 0.5)
    bias = jax.random.uniform(k_b, (1, prototype_size),
                              dtype=jnp.float32, minval=-bbound, maxval=bbound)
    # prototype_vectors = ones(num_prototypes, prototype_size) (default init)
    prototypes = jnp.ones((num_prototypes, prototype_size), dtype=jnp.float32)

    ref = _reference(embedded, weight, bias, prototypes)

    # Default path (auto-selected tiles; row axis is split into >= 2 steps).
    scores = jax.block_until_ready(
        prototypical_decoder(embedded, weight, bias, prototypes))
    assert scores.shape == (N, num_prototypes)
    assert scores.dtype == jnp.float32
    assert jnp.allclose(scores, ref, atol=1e-4, rtol=1e-4), "mismatch vs reference"

    # Explicit small row tile (multi-step pipelined row loop).
    scores2 = jax.block_until_ready(
        prototypical_decoder(embedded, weight, bias, prototypes, tile_n=8))
    assert jnp.allclose(scores2, ref, atol=1e-4, rtol=1e-4), "mismatch vs reference (tiled)"

    # bf16 MXU-operand path (f32 accumulation / f32 epilogue), relaxed tolerance.
    scores3 = jax.block_until_ready(
        prototypical_decoder(embedded, weight, bias, prototypes, use_bf16_matmul=True))
    assert jnp.allclose(scores3, ref, atol=1.0, rtol=5e-2), "mismatch vs reference (bf16)"

    # Medium shapes: exercises the K grid axis (2 K-blocks, second partial) and
    # partial row blocks (N not a multiple of the row tile).
    N2, E2, D2, K2 = 300, 96, 64, 1300
    k1, k2, k3, k4 = jax.random.split(jax.random.PRNGKey(1), 4)
    emb2 = jax.random.normal(k1, (N2, E2), dtype=jnp.float32)
    w2 = jax.random.normal(k2, (E2, D2), dtype=jnp.float32) * 0.1
    b2 = jax.random.normal(k3, (1, D2), dtype=jnp.float32) * 0.1
    prot2 = jax.random.normal(k4, (K2, D2), dtype=jnp.float32)
    ref2 = _reference(emb2, w2, b2, prot2)
    out2 = jax.block_until_ready(prototypical_decoder(emb2, w2, b2, prot2))
    assert out2.shape == (N2, K2)
    assert jnp.allclose(out2, ref2, atol=1e-2, rtol=1e-4), "mismatch vs reference (medium)"

    print("KERNEL_OK")
</pallas_src>

<mosaic_0001>
module attributes {stable_mosaic.version = 11 : i64} {
  func.func @_proto_decoder_kernel(%arg0: i32, %arg1: i32, %arg2: memref<8x32xf32, #tpu.memory_space<vmem>>, %arg3: memref<32x128xf32, #tpu.memory_space<vmem>>, %arg4: memref<1x128xf32, #tpu.memory_space<vmem>>, %arg5: memref<128x128xf32, #tpu.memory_space<vmem>>, %arg6: memref<1x128xf32, #tpu.memory_space<vmem>>, %arg7: memref<8x128xf32, #tpu.memory_space<vmem>>) attributes {dimension_semantics = [#tpu.dimension_semantics<parallel>, #tpu.dimension_semantics<parallel>], iteration_bounds = array<i64: 2, 1>, scalar_prefetch = 0 : i64, scratch_operands = 0 : i64, tpu.core_type = #tpu.core_type<tc>, window_params = [{transform_indices = @transform_0, window_bounds = array<i64: 8, 32>}, {pipeline_mode = #tpu.pipeline_mode<synchronous>, transform_indices = @transform_1, window_bounds = array<i64: 32, 128>}, {pipeline_mode = #tpu.pipeline_mode<synchronous>, transform_indices = @transform_2, window_bounds = array<i64: 1, 128>}, {pipeline_mode = #tpu.pipeline_mode<synchronous>, transform_indices = @transform_3, window_bounds = array<i64: 128, 128>}, {pipeline_mode = #tpu.pipeline_mode<synchronous>, transform_indices = @transform_4, window_bounds = array<i64: 1, 128>}, {transform_indices = @transform_5, window_bounds = array<i64: 8, 128>}]} {
    %c0 = arith.constant 0 : index
    %c0_0 = arith.constant 0 : index
    %0 = vector.load %arg2[%c0, %c0_0] : memref<8x32xf32, #tpu.memory_space<vmem>>, vector<8x32xf32>
    %c0_1 = arith.constant 0 : index
    %c0_2 = arith.constant 0 : index
    %1 = vector.load %arg3[%c0_1, %c0_2] : memref<32x128xf32, #tpu.memory_space<vmem>>, vector<32x128xf32>
    %cst = arith.constant dense<0.000000e+00> : vector<8x128xf32>
    %2 = tpu.matmul %0, %1, %cst {dimension_numbers = #tpu.dot_dimension_numbers<[1], [0], [0], [1], [0, 0, 1, 1], [], []>} : vector<8x32xf32>, vector<32x128xf32>, vector<8x128xf32> -> vector<8x128xf32>
    %c0_3 = arith.constant 0 : index
    %c0_4 = arith.constant 0 : index
    %3 = vector.load %arg4[%c0_3, %c0_4] : memref<1x128xf32, #tpu.memory_space<vmem>>, vector<1x128xf32>
    %4 = vector.broadcast %3 : vector<1x128xf32> to vector<8x128xf32>
    %5 = arith.addf %2, %4 : vector<8x128xf32>
    %c0_5 = arith.constant 0 : index
    %c0_6 = arith.constant 0 : index
    %6 = vector.load %arg5[%c0_5, %c0_6] : memref<128x128xf32, #tpu.memory_space<vmem>>, vector<128x128xf32>
    %cst_7 = arith.constant dense<0.000000e+00> : vector<8x128xf32>
    %7 = tpu.matmul %5, %6, %cst_7 {dimension_numbers = #tpu.dot_dimension_numbers<[1], [0], [0], [1], [0, 0, 1, 1], [], []>} : vector<8x128xf32>, vector<128x128xf32>, vector<8x128xf32> -> vector<8x128xf32>
    %8 = arith.mulf %5, %5 : vector<8x128xf32>
    %cst_8 = arith.constant dense<0.000000e+00> : vector<8xf32>
    %9 = vector.multi_reduction <add>, %8, %cst_8 [1] : vector<8x128xf32> to vector<8xf32>
    %10 = vector.shape_cast %9 : vector<8xf32> to vector<8x1xf32>
    %c0_9 = arith.constant 0 : index
    %c0_10 = arith.constant 0 : index
    %11 = vector.load %arg6[%c0_9, %c0_10] : memref<1x128xf32, #tpu.memory_space<vmem>>, vector<1x128xf32>
    %12 = vector.broadcast %11 : vector<1x128xf32> to vector<8x128xf32>
    %13 = arith.addf %7, %12 : vector<8x128xf32>
    %14 = vector.broadcast %10 : vector<8x1xf32> to vector<8x128xf32>
    %15 = arith.subf %13, %14 : vector<8x128xf32>
    %cst_11 = arith.constant 0.000000e+00 : f32
    %16 = vector.broadcast %cst_11 : f32 to vector<8x128xf32>
    %17 = arith.minimumf %15, %16 : vector<8x128xf32>
    %c0_12 = arith.constant 0 : index
    %c0_13 = arith.constant 0 : index
    %18 = vector.load %arg7[%c0_12, %c0_13] : memref<8x128xf32, #tpu.memory_space<vmem>>, vector<8x128xf32>
    tpu.vector_store %arg7[%c0_12, %c0_13], %17 {strides = array<i32>} : memref<8x128xf32, #tpu.memory_space<vmem>>, vector<8x128xf32>,
    return
  }
  func.func @transform_0(%arg0: i32, %arg1: i32) -> (i32, i32) {
    %c0_i32 = arith.constant 0 : i32
    %c0_i32_0 = arith.constant 0 : i32
    return %arg0, %c0_i32 : i32, i32
  }
  func.func @transform_1(%arg0: i32, %arg1: i32) -> (i32, i32) {
    %c0_i32 = arith.constant 0 : i32
    %c0_i32_0 = arith.constant 0 : i32
    %c0_i32_1 = arith.constant 0 : i32
    return %c0_i32, %c0_i32_0 : i32, i32
  }
  func.func @transform_2(%arg0: i32, %arg1: i32) -> (i32, i32) {
    %c0_i32 = arith.constant 0 : i32
    %c0_i32_0 = arith.constant 0 : i32
    %c0_i32_1 = arith.constant 0 : i32
    return %c0_i32, %c0_i32_0 : i32, i32
  }
  func.func @transform_3(%arg0: i32, %arg1: i32) -> (i32, i32) {
    %c0_i32 = arith.constant 0 : i32
    %c0_i32_0 = arith.constant 0 : i32
    return %c0_i32, %arg1 : i32, i32
  }
  func.func @transform_4(%arg0: i32, %arg1: i32) -> (i32, i32) {
    %c0_i32 = arith.constant 0 : i32
    %c0_i32_0 = arith.constant 0 : i32
    return %c0_i32, %arg1 : i32, i32
  }
  func.func @transform_5(%arg0: i32, %arg1: i32) -> (i32, i32) {
    %c0_i32 = arith.constant 0 : i32
    return %arg0, %arg1 : i32, i32
  }
}

</mosaic_0001>

<llo_original>
// kernel: tpu_custom_call.1
$region0: #{tpu_custom_call.1}
  #allocation0 [shape = 'u32[]', space=smem, size = 0x4, offset = 0x4, fixed_abs, tag = 'smem constant byte address 0x4 - core index']
  #allocation1 [shape = 'u32[144,128]{1,0:T(1,128)}', space=vmem, size = 0x12000, scoped, tag = 'internal scratch']
  %s0 = inlined_call_operand.hbm [shape: f32[16,32], index: 0, kind: input, shape index: {}]
  %s1 = inlined_call_operand.hbm [shape: f32[32,128], index: 1, kind: input, shape index: {}]
  %s2 = inlined_call_operand.vmem [shape: f32[1,128], index: 2, kind: input, shape index: {}]
  %s3 = inlined_call_operand.hbm [shape: f32[128,128], index: 3, kind: input, shape index: {}]
  %s4 = inlined_call_operand.vmem [shape: f32[1,128], index: 4, kind: input, shape index: {}]
  %s5 = inlined_call_operand.hbm [shape: f32[16,128], index: 5, kind: output, shape index: {}]
  %s6 = sld [smem:[#allocation0]]
  $region65: #{tpu_custom_call.1} parent=0
    _
  %s8 = ssub.s32 1, %s6
  %s9 = scalar_select 0, %s8, %s6
  $region1: #{tpu_custom_call.1} parent=0
    #allocation2 [shape = 'u8[8192]{0}', space=vmem, size = 0x2000, scoped, tag = 'input window, operand 0']
    #allocation3 [shape = 's32[2]{0}', space=sflag, size = 0x8, scoped, tag = 'scoped memory for tpu_custom_call.1']
    #allocation4 [shape = 's32[2]{0}', space=sflag, size = 0x8, scoped, tag = 'scoped memory for tpu_custom_call.1']
    #allocation5 [shape = 'u8[16384]{0}', space=vmem, size = 0x4000, scoped, tag = 'input window, operand 1, single buffered']
    #allocation6 [shape = 's32[1]{0}', space=sflag, size = 0x4, scoped, tag = 'scoped memory for tpu_custom_call.1']
    #allocation7 [shape = 'u8[65536]{0}', space=vmem, size = 0x10000, scoped, tag = 'input window, operand 3, single buffered']
    #allocation8 [shape = 'u8[8192]{0}', space=vmem, size = 0x2000, scoped, tag = 'output window, operand 0']
    %10 = vsyncpa [#allocation3], 0
    %s11 = scalar_lea.sflag [#allocation3], 1
    %12 = vsyncpa %s11, 0
    %13 = vsyncpa [#allocation6], 0
    %14 = vsyncpa [#allocation4], 0
    %s15 = scalar_lea.sflag [#allocation4], 1
    %16 = vsyncpa %s15, 0
    loop: start=0, step=1, limit=4
    $region2: #{tpu_custom_call.1} parent=1 // loop_pre_header
      _
    $region3: #{tpu_custom_call.1} parent=1 // loop_header
      %s18 = sphi 0, %s22
      %p19 = scmp.ge.s32.totalorder %s18, 4
      %s25 = sphi 0, %s37
      %s26 = sphi 0, %s33
      %s27 = sphi 0, %s25
      %s28 = sphi 0, %s26
      %s29 = sphi 0, %s27
      %s30 = sphi 0, %s28
      %s40 = sphi 0, %s42
      %s43 = sphi 0, %s40
      %s44 = sphi 0, %s43
      %s60 = sphi 0, %s44
      %s64 = sphi 0, %s64
      %s66 = sphi 0, %s64
      %s67 = sphi 0, %s66
      %s81 = sphi 0, %s67
      %s85 = sphi 0, %s85
      %s87 = sphi 0, %s85
      %s88 = sphi 0, %s87
      %s102 = sphi 0, %s88
      %s108 = sphi 0, %s110
      %s111 = sphi 0, %s108
      %s112 = sphi 0, %s111
      %s128 = sphi 0, %s112
      %s134 = sphi 0, %s136
      %s137 = sphi 0, %s134
      %s138 = sphi 0, %s137
      %s154 = sphi 0, %s138
      %s162 = sphi 0, %s164
      %s165 = sphi 0, %s162
      %s166 = sphi 0, %s165
      %s182 = sphi 0, %s166
    $region4: #{tpu_custom_call.1} parent=1 // loop_header_branch
      %21 = sbr.rel (%p19) target = $region8
    $region5: #{tpu_custom_call.1} parent=1 // loop_body
      %s23 = ssub.s32 %s18, 1
      %s24 = ssub.s32 %s18, 2
      %s31 = sadd.s32 1, %s26
      %p32 = scmp.ge.s32.totalorder %s31, 1
      %s33 = scalar_select %p32, 0, %s31
      %s34 = sadd.s32 1, %s25
      %s35 = scalar_select %p32, %s34, %s25
      %p36 = scmp.ge.s32.totalorder %s35, 2
      %s37 = scalar_select %p36, 0, %s35
      %s38 = ssub.s32 %s25, %s37
      %p39 = scmp.eq.s32.totalorder %s38, 0
      %s41 = sadd.s32 %s40, 1
      %s42 = scalar_select %p39, %s40, %s41
      %p45 = pneg %p39
      %p46 = scmp.eq.s32.totalorder %s18, 1
      %p47 = por %p45, %p46
      %p48 = scmp.ne.s32.totalorder %s40, %s43
      %p49 = scmp.eq.s32.totalorder %s18, 0
      %p50 = por %p48, %p49
      %p51 = scmp.ne.s32.totalorder %s40, %s43
      %p52 = scmp.eq.s32.totalorder %s23, 1
      %p53 = por %p51, %p52
      %p54 = scmp.ne.s32.totalorder %s43, %s44
      %p55 = scmp.eq.s32.totalorder %s23, 0
      %p56 = por %p54, %p55
      %p57 = scmp.ne.s32.totalorder %s43, %s44
      %p58 = scmp.eq.s32.totalorder %s24, 1
      %p59 = por %p57, %p58
      %p61 = scmp.ne.s32.totalorder %s44, %s60
      %p62 = scmp.eq.s32.totalorder %s24, 0
      %p63 = por %p61, %p62
      %s65 = sadd.s32 %s64, 1
      %p68 = scmp.eq.s32.totalorder %s18, 1
      %p69 = scmp.ne.s32.totalorder %s64, %s66
      %p70 = scmp.eq.s32.totalorder %s18, 0
      %p71 = por %p69, %p70
      %p72 = scmp.ne.s32.totalorder %s64, %s66
      %p73 = scmp.eq.s32.totalorder %s23, 1
      %p74 = por %p72, %p73
      %p75 = scmp.ne.s32.totalorder %s66, %s67
      %p76 = scmp.eq.s32.totalorder %s23, 0
      %p77 = por %p75, %p76
      %p78 = scmp.ne.s32.totalorder %s66, %s67
      %p79 = scmp.eq.s32.totalorder %s24, 1
      %p80 = por %p78, %p79
      %p82 = scmp.ne.s32.totalorder %s67, %s81
      %p83 = scmp.eq.s32.totalorder %s24, 0
      %p84 = por %p82, %p83
      %s86 = sadd.s32 %s85, 1
      %p89 = scmp.eq.s32.totalorder %s18, 1
      %p90 = scmp.ne.s32.totalorder %s85, %s87
      %p91 = scmp.eq.s32.totalorder %s18, 0
      %p92 = por %p90, %p91
      %p93 = scmp.ne.s32.totalorder %s85, %s87
      %p94 = scmp.eq.s32.totalorder %s23, 1
      %p95 = por %p93, %p94
      %p96 = scmp.ne.s32.totalorder %s87, %s88
      %p97 = scmp.eq.s32.totalorder %s23, 0
      %p98 = por %p96, %p97
      %p99 = scmp.ne.s32.totalorder %s87, %s88
      %p100 = scmp.eq.s32.totalorder %s24, 1
      %p101 = por %p99, %p100
      %p103 = scmp.ne.s32.totalorder %s88, %s102
      %p104 = scmp.eq.s32.totalorder %s24, 0
      %p105 = por %p103, %p104
      %s106 = ssub.s32 %s26, %s33
      %p107 = scmp.eq.s32.totalorder %s106, 0
      %s109 = sadd.s32 %s108, 1
      %s110 = scalar_select %p107, %s108, %s109
      %p113 = pneg %p107
      %p114 = scmp.eq.s32.totalorder %s18, 1
      %p115 = por %p113, %p114
      %p116 = scmp.ne.s32.totalorder %s108, %s111
      %p117 = scmp.eq.s32.totalorder %s18, 0
      %p118 = por %p116, %p117
      %p119 = scmp.ne.s32.totalorder %s108, %s111
      %p120 = scmp.eq.s32.totalorder %s23, 1
      %p121 = por %p119, %p120
      %p122 = scmp.ne.s32.totalorder %s111, %s112
      %p123 = scmp.eq.s32.totalorder %s23, 0
      %p124 = por %p122, %p123
      %p125 = scmp.ne.s32.totalorder %s111, %s112
      %p126 = scmp.eq.s32.totalorder %s24, 1
      %p127 = por %p125, %p126
      %p129 = scmp.ne.s32.totalorder %s112, %s128
      %p130 = scmp.eq.s32.totalorder %s24, 0
      %p131 = por %p129, %p130
      %s132 = ssub.s32 %s26, %s33
      %p133 = scmp.eq.s32.totalorder %s132, 0
      %s135 = sadd.s32 %s134, 1
      %s136 = scalar_select %p133, %s134, %s135
      %p139 = pneg %p133
      %p140 = scmp.eq.s32.totalorder %s18, 1
      %p141 = por %p139, %p140
      %p142 = scmp.ne.s32.totalorder %s134, %s137
      %p143 = scmp.eq.s32.totalorder %s18, 0
      %p144 = por %p142, %p143
      %p145 = scmp.ne.s32.totalorder %s134, %s137
      %p146 = scmp.eq.s32.totalorder %s23, 1
      %p147 = por %p145, %p146
      %p148 = scmp.ne.s32.totalorder %s137, %s138
      %p149 = scmp.eq.s32.totalorder %s23, 0
      %p150 = por %p148, %p149
      %p151 = scmp.ne.s32.totalorder %s137, %s138
      %p152 = scmp.eq.s32.totalorder %s24, 1
      %p153 = por %p151, %p152
      %p155 = scmp.ne.s32.totalorder %s138, %s154
      %p156 = scmp.eq.s32.totalorder %s24, 0
      %p157 = por %p155, %p156
      %s158 = ssub.s32 %s25, %s37
      %s159 = ssub.s32 %s26, %s33
      %s160 = sor.u32 %s158, %s159
      %p161 = scmp.eq.s32.totalorder %s160, 0
      %s163 = sadd.s32 %s162, 1
      %s164 = scalar_select %p161, %s162, %s163
      %p167 = pneg %p161
      %p168 = scmp.eq.s32.totalorder %s18, 1
      %p169 = por %p167, %p168
      %p170 = scmp.ne.s32.totalorder %s162, %s165
      %p171 = scmp.eq.s32.totalorder %s18, 0
      %p172 = por %p170, %p171
      %p173 = scmp.ne.s32.totalorder %s162, %s165
      %p174 = scmp.eq.s32.totalorder %s23, 1
      %p175 = por %p173, %p174
      %p176 = scmp.ne.s32.totalorder %s165, %s166
      %p177 = scmp.eq.s32.totalorder %s23, 0
      %p178 = por %p176, %p177
      %p179 = scmp.ne.s32.totalorder %s165, %s166
      %p180 = scmp.eq.s32.totalorder %s24, 1
      %p181 = por %p179, %p180
      %p183 = scmp.ne.s32.totalorder %s166, %s182
      %p184 = scmp.eq.s32.totalorder %s24, 0
      %p185 = por %p183, %p184
      %p186 = scmp.le.s32.totalorder 1, %s18
      %p187 = scmp.lt.s32.totalorder %s18, 3
      %p188 = pnand %p186, %p187
      %p189 = pneg %p188
      // Predicated region
      $region9: #{tpu_custom_call.1} parent=5 // pred_check
        _
      $region10: #{tpu_custom_call.1} parent=5 // pred_check_branch
        %191 = sbr.rel (%p188) target = $region12
      $region11: #{tpu_custom_call.1} parent=5 // pred_region
        %s192 = ssub.s32 %s18, 1
        // Predicated region
        $region13: #{tpu_custom_call.1} parent=11 // pred_check
          %p193 = pneg %p77
        $region14: #{tpu_custom_call.1} parent=11 // pred_check_branch
          %195 = sbr.rel (%p193) target = $region16
        $region15: #{tpu_custom_call.1} parent=11 // pred_region
          %s197 = ssub.s32 512, 512
          %198 = vsyncadd [#allocation6], %s197
          %s199 = sshll.u32 [#allocation5], 4
          %s200 = int_to_ptr.vmem [resolvable:$true] %s199
          %205 = dma.hbm_to_vmem [thread:$0]  %s1, 512, %s200, [#allocation6], 128, 128, 8
        $region16: #{tpu_custom_call.1} parent=11 // pred_fallthru
          _
        // Predicated region
        $region17: #{tpu_custom_call.1} parent=11 // pred_check
          %p206 = pneg %p98
        $region18: #{tpu_custom_call.1} parent=11 // pred_check_branch
          %208 = sbr.rel (%p206) target = $region20
        $region19: #{tpu_custom_call.1} parent=11 // pred_region
          _
        $region20: #{tpu_custom_call.1} parent=11 // pred_fallthru
          _
        // Predicated region
        $region21: #{tpu_custom_call.1} parent=11 // pred_check
          %p209 = pneg %p124
        $region22: #{tpu_custom_call.1} parent=11 // pred_check_branch
          %211 = sbr.rel (%p209) target = $region24
        $region23: #{tpu_custom_call.1} parent=11 // pred_region
          %s213 = ssub.s32 2048, 2048
          %214 = vsyncadd [#allocation6], %s213
          %s215 = smul.addr %s28, 128
          %s216 = scalar_lea.hbm %s3, %s215
          %s217 = sshll.u32 [#allocation7], 4
          %s218 = int_to_ptr.vmem [resolvable:$true] %s217
          %223 = dma.hbm_to_vmem [thread:$0]  %s216, 2048, %s218, [#allocation6], 128, 128, 8
        $region24: #{tpu_custom_call.1} parent=11 // pred_fallthru
          _
        // Predicated region
        $region25: #{tpu_custom_call.1} parent=11 // pred_check
          %p224 = pneg %p150
        $region26: #{tpu_custom_call.1} parent=11 // pred_check_branch
          %226 = sbr.rel (%p224) target = $region28
        $region27: #{tpu_custom_call.1} parent=11 // pred_region
          %p227 = scmp.lt.s32.totalorder %s28, 0
          %s228 = scalar_select %p227, %s28, 0
          %s229 = scalar_lea.vmem %s4, %s228
        $region28: #{tpu_custom_call.1} parent=11 // pred_fallthru
          _
      $region12: #{tpu_custom_call.1} parent=5 // pred_fallthru
        _
      %p230 = scmp.lt.s32.totalorder %s18, 2
      // Predicated region
      $region29: #{tpu_custom_call.1} parent=5 // pred_check
        %p231 = pneg %p230
      $region30: #{tpu_custom_call.1} parent=5 // pred_check_branch
        %233 = sbr.rel (%p231) target = $region32
      $region31: #{tpu_custom_call.1} parent=5 // pred_region
        // Predicated region
        $region33: #{tpu_custom_call.1} parent=31 // pred_check
          %p234 = pneg %p50
        $region34: #{tpu_custom_call.1} parent=31 // pred_check_branch
          %236 = sbr.rel (%p234) target = $region36
        $region35: #{tpu_custom_call.1} parent=31 // pred_region
          %s237 = sand.u32 %s40, 1
          %s238 = scalar_lea.sflag [#allocation3], %s237
          %s239 = sand.u32 %s40, 1
          %s240 = smul.addr %s239, 8
          %s241 = scalar_lea.vmem [#allocation2], %s240
          %s243 = ssub.s32 128, 128
          %244 = vsyncadd %s238, %s243
          %s245 = smul.addr %s25, 128
          %s246 = scalar_lea.hbm %s0, %s245
          %s248 = sshll.u32 %s241, 4
          %s249 = int_to_ptr.vmem [resolvable:$true] %s248
          %251 = dma.hbm_to_vmem [thread:$0]  %s246, 128, %s249, %s238
        $region36: #{tpu_custom_call.1} parent=31 // pred_fallthru
          _
      $region32: #{tpu_custom_call.1} parent=5 // pred_fallthru
        _
      %p252 = scmp.le.s32.totalorder 1, %s18
      %p253 = scmp.lt.s32.totalorder %s18, 3
      %p254 = pnand %p252, %p253
      %p255 = pneg %p254
      // Predicated region
      $region37: #{tpu_custom_call.1} parent=5 // pred_check
        _
      $region38: #{tpu_custom_call.1} parent=5 // pred_check_branch
        %257 = sbr.rel (%p254) target = $region40
      $region39: #{tpu_custom_call.1} parent=5 // pred_region
        %s258 = ssub.s32 %s18, 1
        %s259 = sand.u32 %s43, 1
        %s260 = scalar_lea.sflag [#allocation3], %s259
        %s261 = sand.u32 %s43, 1
        %s262 = smul.addr %s261, 8
        %s263 = scalar_lea.vmem [#allocation2], %s262
        // Predicated region
        $region41: #{tpu_custom_call.1} parent=39 // pred_check
          %p264 = pneg %p56
        $region42: #{tpu_custom_call.1} parent=39 // pred_check_branch
          %266 = sbr.rel (%p264) target = $region44
        $region43: #{tpu_custom_call.1} parent=39 // pred_region
          %267 = dma.done %s260, 128
        $region44: #{tpu_custom_call.1} parent=39 // pred_fallthru
          _
        // Predicated region
        $region45: #{tpu_custom_call.1} parent=39 // pred_check
          %p268 = pneg %p77
        $region46: #{tpu_custom_call.1} parent=39 // pred_check_branch
          %270 = sbr.rel (%p268) target = $region48
        $region47: #{tpu_custom_call.1} parent=39 // pred_region
          %271 = dma.done [#allocation6], 512
        $region48: #{tpu_custom_call.1} parent=39 // pred_fallthru
          _
        // Predicated region
        $region49: #{tpu_custom_call.1} parent=39 // pred_check
          %p272 = pneg %p124
        $region50: #{tpu_custom_call.1} parent=39 // pred_check_branch
          %274 = sbr.rel (%p272) target = $region52
        $region51: #{tpu_custom_call.1} parent=39 // pred_region
          %275 = dma.done [#allocation6], 2048
        $region52: #{tpu_custom_call.1} parent=39 // pred_fallthru
          _
        %s276 = sand.u32 %s43, 1
        %s277 = scalar_lea.sflag [#allocation3], %s276
        %s278 = sand.u32 %s43, 1
        %s279 = smul.addr %s278, 8
        %s280 = scalar_lea.vmem [#allocation2], %s279
        %p281 = pneg %p56
        %p282 = pneg %p53
        %p283 = pneg %p77
        %p284 = pneg %p74
        %p285 = pneg %p98
        %p286 = pneg %p95
        %p287 = pneg %p124
        %p288 = pneg %p121
        %p289 = scmp.lt.s32.totalorder %s28, 0
        %s290 = scalar_select %p289, %s28, 0
        %s291 = scalar_lea.vmem %s4, %s290
        %p292 = pneg %p150
        %p293 = pneg %p147
        %p294 = pneg %p178
        %p295 = pneg %p175
        %s296 = sand.u32 %s165, 1
        %s297 = scalar_lea.sflag [#allocation4], %s296
        %s298 = sand.u32 %s165, 1
        %s299 = smul.addr %s298, 8
        %s300 = scalar_lea.vmem [#allocation8], %s299
        %p301 = scmp.lt.s32.totalorder %s28, 0
        %s302 = scalar_select %p301, %s28, 0
        %s303 = scalar_lea.vmem %s4, %s302
        %v304 = vld [vmem:[%s263] sm:$0xff]
        %v305 = vld [vmem:[#allocation5] sm:$0xff]
        %v306 = vld [vmem:[#allocation5 + $0x8] sm:$0xff]
        %v307 = vld [vmem:[#allocation5 + $0x10] sm:$0xff]
        %v308 = vld [vmem:[#allocation5 + $0x18] sm:$0xff]
        %v309 = vld [vmem:[%s2] sm:$0x1]
        %v311 = vlaneseq
        %v312 = vshrl.u32 %v311, 7
        %v313 = vsub.s32 0, %v312
        %v314 = vrot.slane %v309, %v313
        %vm316 = vcmask 261120
        %v318 = vsel %vm316, %v304, 0
        %320 = vmatprep.subr.mxu0 0.0
        %321 = vmatpush1.msra.mxu0 %v305
        %322 = vmatprep.subr.mxu0 0.0
        %323 = vmatpush1.msra.mxu0 %v306
        %324 = vmatprep.subr.mxu0 0.0
        %325 = vmatpush1.msra.mxu0 %v307
        %326 = vmatprep.subr.mxu0 0.0
        %327 = vmatpush1.msra.mxu0 %v308
        %328 = vmatprep.subr.mxu0 0.0
        %329 = vmatpush1.msra.mxu0 0.0
        %330 = vmatprep.subr.mxu0 0.0
        %331 = vmatpush1.msra.mxu0 0.0
        %332 = vmatprep.subr.mxu0 0.0
        %333 = vmatpush1.msra.mxu0 0.0
        %334 = vmatprep.subr.mxu0 0.0
        %335 = vmatpush1.msra.mxu0 0.0
        %336 = vmatprep.subr.mxu0 0.0
        %337 = vmatpush1.msra.mxu0 0.0
        %338 = vmatprep.subr.mxu0 0.0
        %339 = vmatpush1.msra.mxu0 0.0
        %340 = vmatprep.subr.mxu0 0.0
        %341 = vmatpush1.msra.mxu0 0.0
        %342 = vmatprep.subr.mxu0 0.0
        %343 = vmatpush1.msra.mxu0 0.0
        %344 = vmatprep.subr.mxu0 0.0
        %345 = vmatpush1.msra.mxu0 0.0
        %346 = vmatprep.subr.mxu0 0.0
        %347 = vmatpush1.msra.mxu0 0.0
        %348 = vmatprep.subr.mxu0 0.0
        %349 = vmatpush1.msra.mxu0 0.0
        %350 = vmatprep.subr.mxu0 0.0
        %351 = vmatpush1.msra.mxu0 0.0
        %352 = vmatprep.subr.mxu0 0.0
        %353 = vmatpush1.msra.mxu0 0.0
        %354 = vmatprep.subr.mxu0 0.0
        %355 = vmatpush1.msra.mxu0 0.0
        %356 = vmatprep.subr.mxu0 0.0
        %357 = vmatpush1.msra.mxu0 0.0
        %358 = vmatprep.subr.mxu0 0.0
        %359 = vmatpush1.msra.mxu0 0.0
        %360 = vmatprep.subr.mxu0 0.0
        %361 = vmatpush1.msra.mxu0 0.0
        %362 = vmatprep.subr.mxu0 0.0
        %363 = vmatpush1.msra.mxu0 0.0
        %364 = vmatprep.subr.mxu0 0.0
        %365 = vmatpush1.msra.mxu0 0.0
        %366 = vmatprep.subr.mxu0 0.0
        %367 = vmatpush1.msra.mxu0 0.0
        %368 = vmatprep.subr.mxu0 0.0
        %369 = vmatpush1.msra.mxu0 0.0
        %370 = vmatprep.subr.mxu0 0.0
        %371 = vmatpush1.msra.mxu0 0.0
        %372 = vmatprep.subr.mxu0 0.0
        %373 = vmatpush1.msra.mxu0 0.0
        %374 = vmatprep.subr.mxu0 0.0
        %375 = vmatpush1.msra.mxu0 0.0
        %376 = vmatprep.subr.mxu0 0.0
        %377 = vmatpush1.msra.mxu0 0.0
        %378 = vmatprep.subr.mxu0 0.0
        %379 = vmatpush1.msra.mxu0 0.0
        %380 = vmatprep.subr.mxu0 0.0
        %381 = vmatpush1.msra.mxu0 0.0
        %382 = vmatprep.subr.mxu0 0.0
        %383 = vmatpush1.msra.mxu0 0.0
        %384 = vmatprep.mubr.f32.mxu0 0.0
        %385 = vmatmul.mubr.f32.gmra.mrb[0].mxu0 %v318
        %v386 = vpop.f32.mrb[0].mxu0
        %v387 = vadd.f32 %v314, %v386
        %v388 = vpop.f32.mrb[0].mxu0
        %389 = vdwg.mxu0
        %v390 = vld [vmem:[#allocation7] sm:$0xff]
        %v391 = vld [vmem:[#allocation7 + $0x8] sm:$0xff]
        %v392 = vld [vmem:[#allocation7 + $0x10] sm:$0xff]
        %v393 = vld [vmem:[#allocation7 + $0x18] sm:$0xff]
        %v394 = vld [vmem:[#allocation7 + $0x20] sm:$0xff]
        %v395 = vld [vmem:[#allocation7 + $0x28] sm:$0xff]
        %v396 = vld [vmem:[#allocation7 + $0x30] sm:$0xff]
        %v397 = vld [vmem:[#allocation7 + $0x38] sm:$0xff]
        %v398 = vld [vmem:[#allocation7 + $0x40] sm:$0xff]
        %v399 = vld [vmem:[#allocation7 + $0x48] sm:$0xff]
        %v400 = vld [vmem:[#allocation7 + $0x50] sm:$0xff]
        %v401 = vld [vmem:[#allocation7 + $0x58] sm:$0xff]
        %v402 = vld [vmem:[#allocation7 + $0x60] sm:$0xff]
        %v403 = vld [vmem:[#allocation7 + $0x68] sm:$0xff]
        %v404 = vld [vmem:[#allocation7 + $0x70] sm:$0xff]
        %v405 = vld [vmem:[#allocation7 + $0x78] sm:$0xff]
        %v406 = vmul.f32 %v387, %v387
        %407 = vadd.xlane.f32.xlu0 %v406
        %v408 = vpop.xlane.xlu0 %407
        %v409 = vld [vmem:[%s303] sm:$0x1]
        %v411 = vlaneseq
        %v412 = vshrl.u32 %v411, 7
        %v413 = vsub.s32 0, %v412
        %v414 = vrot.slane %v409, %v413
        %416 = vmatprep.subr.mxu0 0.0
        %417 = vmatpush1.msra.mxu0 %v390
        %418 = vmatprep.subr.mxu0 0.0
        %419 = vmatpush1.msra.mxu0 %v391
        %420 = vmatprep.subr.mxu0 0.0
        %421 = vmatpush1.msra.mxu0 %v392
        %422 = vmatprep.subr.mxu0 0.0
        %423 = vmatpush1.msra.mxu0 %v393
        %424 = vmatprep.subr.mxu0 0.0
        %425 = vmatpush1.msra.mxu0 %v394
        %426 = vmatprep.subr.mxu0 0.0
        %427 = vmatpush1.msra.mxu0 %v395
        %428 = vmatprep.subr.mxu0 0.0
        %429 = vmatpush1.msra.mxu0 %v396
        %430 = vmatprep.subr.mxu0 0.0
        %431 = vmatpush1.msra.mxu0 %v397
        %432 = vmatprep.subr.mxu0 0.0
        %433 = vmatpush1.msra.mxu0 %v398
        %434 = vmatprep.subr.mxu0 0.0
        %435 = vmatpush1.msra.mxu0 %v399
        %436 = vmatprep.subr.mxu0 0.0
        %437 = vmatpush1.msra.mxu0 %v400
        %438 = vmatprep.subr.mxu0 0.0
        %439 = vmatpush1.msra.mxu0 %v401
        %440 = vmatprep.subr.mxu0 0.0
        %441 = vmatpush1.msra.mxu0 %v402
        %442 = vmatprep.subr.mxu0 0.0
        %443 = vmatpush1.msra.mxu0 %v403
        %444 = vmatprep.subr.mxu0 0.0
        %445 = vmatpush1.msra.mxu0 %v404
        %446 = vmatprep.subr.mxu0 0.0
        %447 = vmatpush1.msra.mxu0 %v405
        %448 = vmatprep.subr.mxu0 0.0
        %449 = vmatpush1.msra.mxu0 0.0
        %450 = vmatprep.subr.mxu0 0.0
        %451 = vmatpush1.msra.mxu0 0.0
        %452 = vmatprep.subr.mxu0 0.0
        %453 = vmatpush1.msra.mxu0 0.0
        %454 = vmatprep.subr.mxu0 0.0
        %455 = vmatpush1.msra.mxu0 0.0
        %456 = vmatprep.subr.mxu0 0.0
        %457 = vmatpush1.msra.mxu0 0.0
        %458 = vmatprep.subr.mxu0 0.0
        %459 = vmatpush1.msra.mxu0 0.0
        %460 = vmatprep.subr.mxu0 0.0
        %461 = vmatpush1.msra.mxu0 0.0
        %462 = vmatprep.subr.mxu0 0.0
        %463 = vmatpush1.msra.mxu0 0.0
        %464 = vmatprep.subr.mxu0 0.0
        %465 = vmatpush1.msra.mxu0 0.0
        %466 = vmatprep.subr.mxu0 0.0
        %467 = vmatpush1.msra.mxu0 0.0
        %468 = vmatprep.subr.mxu0 0.0
        %469 = vmatpush1.msra.mxu0 0.0
        %470 = vmatprep.subr.mxu0 0.0
        %471 = vmatpush1.msra.mxu0 0.0
        %472 = vmatprep.subr.mxu0 0.0
        %473 = vmatpush1.msra.mxu0 0.0
        %474 = vmatprep.subr.mxu0 0.0
        %475 = vmatpush1.msra.mxu0 0.0
        %476 = vmatprep.subr.mxu0 0.0
        %477 = vmatpush1.msra.mxu0 0.0
        %478 = vmatprep.subr.mxu0 0.0
        %479 = vmatpush1.msra.mxu0 0.0
        %480 = vmatprep.mubr.f32.mxu0 0.0
        %481 = vmatmul.mubr.f32.gmra.mrb[0].mxu0 %v387
        %v482 = vpop.f32.mrb[0].mxu0
        %v483 = vadd.f32 %v414, %v482
        %v484 = vpop.f32.mrb[0].mxu0
        %485 = vdwg.mxu0
        %v486 = vsub.f32 %v483, %v408
        %v487 = vmin.f32 %v486, 0.0
        %488 = vst [vmem:[%s300] sm:$0xff] %v487
        %s489 = sand.u32 %s165, 1
        %s490 = scalar_lea.sflag [#allocation4], %s489
        %s491 = sand.u32 %s165, 1
        %s492 = smul.addr %s491, 8
        %s493 = scalar_lea.vmem [#allocation8], %s492
        // Predicated region
        $region53: #{tpu_custom_call.1} parent=39 // pred_check
          %p494 = pneg %p175
        $region54: #{tpu_custom_call.1} parent=39 // pred_check_branch
          %496 = sbr.rel (%p494) target = $region56
        $region55: #{tpu_custom_call.1} parent=39 // pred_region
          %s498 = ssub.s32 128, 128
          %499 = vsyncadd %s490, %s498
          %s500 = sadd.s32 %s28, %s27
          %s501 = smul.addr %s500, 128
          %s502 = scalar_lea.hbm %s5, %s501
          %s504 = sshll.u32 %s493, 4
          %s505 = int_to_ptr.vmem [resolvable:$true] %s504
          %507 = dma.vmem_to_hbm [thread:$0]  %s505, 128, %s502, %s490
        $region56: #{tpu_custom_call.1} parent=39 // pred_fallthru
          _
      $region40: #{tpu_custom_call.1} parent=5 // pred_fallthru
        _
      %p508 = scmp.le.s32.totalorder 2, %s18
      // Predicated region
      $region57: #{tpu_custom_call.1} parent=5 // pred_check
        %p509 = pneg %p508
      $region58: #{tpu_custom_call.1} parent=5 // pred_check_branch
        %511 = sbr.rel (%p509) target = $region60
      $region59: #{tpu_custom_call.1} parent=5 // pred_region
        %s512 = ssub.s32 %s18, 2
        // Predicated region
        $region61: #{tpu_custom_call.1} parent=59 // pred_check
          %p513 = pneg %p181
        $region62: #{tpu_custom_call.1} parent=59 // pred_check_branch
          %515 = sbr.rel (%p513) target = $region64
        $region63: #{tpu_custom_call.1} parent=59 // pred_region
          %s516 = sand.u32 %s166, 1
          %s517 = scalar_lea.sflag [#allocation4], %s516
          %s518 = sand.u32 %s166, 1
          %s519 = smul.addr %s518, 8
          %s520 = scalar_lea.vmem [#allocation8], %s519
          %521 = dma.done %s517, 128
        $region64: #{tpu_custom_call.1} parent=59 // pred_fallthru
          _
      $region60: #{tpu_custom_call.1} parent=5 // pred_fallthru
        _
    $region6: #{tpu_custom_call.1} parent=1 // loop_footer
      %s22 = sadd.s32 1, %s18
    $region7: #{tpu_custom_call.1} parent=1 // loop_footer_branch
      %17 = sbr.rel target = $region3
    $region8: #{tpu_custom_call.1} parent=1 // loop_exit
      _
    %522 = vsyncpa [#allocation3], 1
    %s523 = scalar_lea.sflag [#allocation3], 1
    %524 = vsyncpa %s523, 1
    %525 = vsyncpa [#allocation6], 1
    %526 = vsyncpa [#allocation4], 1
    %s527 = scalar_lea.sflag [#allocation4], 1
    %528 = vsyncpa %s527, 1

</llo_original>
